<compile_context>
chip_gen: v7x
topology: tpu7x:2x2x1
jax: 0.10.0
libtpu: 0.0.40
codegen_flags: <defaults>
</compile_context>

<pallas_src>
import jax
import jax.numpy as jnp
from jax.experimental import pallas as pl
from jax.experimental.pallas import tpu as pltpu

HIDDEN = 100            # hidden_size in the PyTorch module
NUM_LAYERS = 5          # num_layers in the PyTorch module
IN_DIM = 5              # x, y, t, F, k
OUT_DIM = 2             # u, v
IN_PAD = 8              # sublane padding of the input feature rows
HID_PAD = 128           # padding of the hidden dim (100 -> 128, MXU tile)
OUT_PAD = 8             # sublane padding of the output rows
TM_MAX = 2048           # max batch (lane) tile
MATMUL_DTYPE = jnp.bfloat16   # hidden-layer matmul operand dtype


def _round_up(x, m):
    return ((x + m - 1) // m) * m


def _cdiv(a, b):
    return -(-a // b)


def _pick_tile(n):
    """Batch (lane) tile size.

    * n <= 1024: one full-extent tile (a block equal to the full lane dim is
      always legal, even if n is not a multiple of 128).
    * n  > 1024: at least two tiles (lets v7x shard the 'parallel' axis over
      its 2 TensorCores), each a multiple of 128, at most TM_MAX.
    """
    if n <= 1024:
        return n
    return min(TM_MAX, _round_up(_cdiv(n, 2), 128))


def _mlp_kernel(x_ref, w1_ref, wh_ref, bh_ref, w5_ref, b5_ref, out_ref):
    """Fused 5-layer MLP, transposed (feature-major, lane = batch) layout.

    x_ref : (8, TM)        input features (5 real rows + 3 zero rows)
    w1_ref: (128, 8)       layer-1 weight, (out, in) layout, zero padded, f32
    wh_ref: (3, 128, 128)  hidden weights for layers 2..4 (bf16, zero padded)
    bh_ref: (128, 4)       biases of layers 1..4 as columns, zero padded, f32
    w5_ref: (8, 128)       head weight (rows 0/1 real), zero padded, f32
    b5_ref: (8, 1)         head bias (rows 0/1 real), f32
    out_ref: (8, TM)       rows 0/1 = u/v, rows 2..7 = 0
    """
    # Layer 1 (K=8): stays f32 to preserve input precision (negligible FLOPs).
    h = jnp.tanh(
        jnp.dot(w1_ref[...], x_ref[...], preferred_element_type=jnp.float32)
        + bh_ref[:, 0:1])
    # Hidden layers 2..4: bf16 operands, f32 accumulation on the MXU.
    for l in range(NUM_LAYERS - 2):
        h = jnp.tanh(
            jnp.dot(wh_ref[l], h.astype(wh_ref.dtype),
                    preferred_element_type=jnp.float32)
            + bh_ref[:, l + 1:l + 2])
    # Head: f32 (tiny), result is already lane-dense along the batch axis.
    out_ref[...] = (
        jnp.dot(w5_ref[...], h, preferred_element_type=jnp.float32)
        + b5_ref[...])


def init_params(key, hidden_size=HIDDEN, num_layers=NUM_LAYERS):
    """Deterministic PyTorch-style (uniform +-1/sqrt(fan_in)) init."""
    dims = [IN_DIM] + [hidden_size] * (num_layers - 1) + [OUT_DIM]
    params = []
    for i in range(len(dims) - 1):
        fan_in, fan_out = dims[i], dims[i + 1]
        key, kw, kb = jax.random.split(key, 3)
        bound = 1.0 / jnp.sqrt(fan_in)
        # Math layout (in, out); reference does h @ w + b.
        w = jax.random.uniform(kw, (fan_in, fan_out), jnp.float32, -bound, bound)
        b = jax.random.uniform(kb, (fan_out,), jnp.float32, -bound, bound)
        params.append((w, b))
    return params


def pack_params(raw_params, hidden_matmul_dtype=MATMUL_DTYPE):
    """Pad + pack raw MLP params into the 5 kernel operands (transposed)."""
    (w1, b1), (w2, b2), (w3, b3), (w4, b4), (w5, b5) = raw_params
    assert w1.shape[1] <= HID_PAD

    def pad_t(w, rows, cols):      # (in, out) -> (out, in), zero padded
        wt = w.T.astype(jnp.float32)
        out = jnp.zeros((rows, cols), jnp.float32)
        return out.at[: wt.shape[0], : wt.shape[1]].set(wt)

    w1_p = pad_t(w1, HID_PAD, IN_PAD)                                  # (128, 8)
    wh_p = jnp.stack([pad_t(w, HID_PAD, HID_PAD) for w in (w2, w3, w4)]
                     ).astype(hidden_matmul_dtype)                     # (3,128,128)
    bh_p = jnp.zeros((HID_PAD, NUM_LAYERS - 1), jnp.float32)
    for i, b in enumerate((b1, b2, b3, b4)):
        bh_p = bh_p.at[: b.shape[0], i].set(b)                         # (128, 4)
    w5_p = pad_t(w5, OUT_PAD, HID_PAD)                                 # (8, 128)
    b5_p = jnp.zeros((OUT_PAD, 1), jnp.float32).at[: b5.shape[0], 0].set(b5)
    return (w1_p, wh_p, bh_p, w5_p, b5_p)


@jax.jit
def gray_scott_pinn_forward(x, y, t, F, k, packed_params):
    """JAX/Pallas equivalent of GrayScottPINN.forward.

    x, y, t, F, k: float32 arrays of shape [N, 1].  Returns (u, v), each [N, 1].
    """
    n = x.shape[0]
    # (8, N) feature slab: 5 real rows + 3 zero rows.  Transposing an (N, 1)
    # array is just a reshape, so this is a single cheap concatenation pass.
    feats = jnp.concatenate(
        [x.T, y.T, t.T, F.T, k.T,
         jnp.zeros((IN_PAD - IN_DIM, n), jnp.float32)],
        axis=0).astype(jnp.float32)

    w1_p, wh_p, bh_p, w5_p, b5_p = packed_params

    tm = _pick_tile(n)
    grid = (_cdiv(n, tm),)

    out = pl.pallas_call(
        _mlp_kernel,
        out_shape=jax.ShapeDtypeStruct((OUT_PAD, n), jnp.float32),
        grid_spec=pltpu.PrefetchScalarGridSpec(
            num_scalar_prefetch=0,
            grid=grid,
            in_specs=[
                pl.BlockSpec((IN_PAD, tm), lambda i: (0, i)),             # x
                pl.BlockSpec((HID_PAD, IN_PAD), lambda i: (0, 0)),        # w1
                pl.BlockSpec((NUM_LAYERS - 2, HID_PAD, HID_PAD),
                             lambda i: (0, 0, 0)),                        # w2..w4
                pl.BlockSpec((HID_PAD, NUM_LAYERS - 1), lambda i: (0, 0)),  # b1..b4
                pl.BlockSpec((OUT_PAD, HID_PAD), lambda i: (0, 0)),       # w5
                pl.BlockSpec((OUT_PAD, 1), lambda i: (0, 0)),             # b5
            ],
            out_specs=pl.BlockSpec((OUT_PAD, tm), lambda i: (0, i)),
        ),
        compiler_params=pltpu.CompilerParams(
            dimension_semantics=("parallel",),
            vmem_limit_bytes=32 * 1024 * 1024),
    )(feats, w1_p, wh_p, bh_p, w5_p, b5_p)

    u = out[0, :].reshape(n, 1)
    v = out[1, :].reshape(n, 1)
    return u, v


def _reference_forward(x, y, t, F, k, raw_params):
    """Plain-JAX f32 reference (mirrors the PyTorch nn.Sequential exactly)."""
    h = jnp.concatenate([x, y, t, F, k], axis=1)
    for i, (w, b) in enumerate(raw_params):
        h = h @ w + b
        if i < len(raw_params) - 1:
            h = jnp.tanh(h)
    return h[:, 0:1], h[:, 1:2]


def _make_inputs(key, n):
    kx, ky, kt, kF, kk = jax.random.split(key, 5)
    x = jax.random.uniform(kx, (n, 1), jnp.float32)
    y = jax.random.uniform(ky, (n, 1), jnp.float32)
    t = jax.random.uniform(kt, (n, 1), jnp.float32)
    F = jax.random.uniform(kF, (n, 1), jnp.float32) * 0.06
    k = jax.random.uniform(kk, (n, 1), jnp.float32) * 0.06
    return x, y, t, F, k


if __name__ == "__main__":
    key = jax.random.PRNGKey(0)
    kp, k1, k2 = jax.random.split(key, 3)

    raw_params = init_params(kp)
    packed_params = pack_params(raw_params)

    # bf16 hidden matmuls (f32 accumulation) -> compare to the f32 reference
    # with a correspondingly relaxed tolerance.
    TOL = 2e-2

    # Case 1: tiny batch (single full-extent tile, lane dim < 128).
    x, y, t, F, k = _make_inputs(k1, 8)
    u, v = gray_scott_pinn_forward(x, y, t, F, k, packed_params)
    jax.block_until_ready((u, v))
    u_ref, v_ref = _reference_forward(x, y, t, F, k, raw_params)
    assert u.shape == (8, 1) and v.shape == (8, 1)
    assert jnp.allclose(u, u_ref, atol=TOL), "u mismatch (small batch)"
    assert jnp.allclose(v, v_ref, atol=TOL), "v mismatch (small batch)"

    # Case 2: multi-tile batch with a ragged last block (tm=768, grid=2).
    N2 = 1500
    x2, y2, t2, F2, k2v = _make_inputs(k2, N2)
    u2, v2 = gray_scott_pinn_forward(x2, y2, t2, F2, k2v, packed_params)
    jax.block_until_ready((u2, v2))
    u2_ref, v2_ref = _reference_forward(x2, y2, t2, F2, k2v, raw_params)
    assert u2.shape == (N2, 1) and v2.shape == (N2, 1)
    assert jnp.allclose(u2, u2_ref, atol=TOL), "u mismatch (multi-tile batch)"
    assert jnp.allclose(v2, v2_ref, atol=TOL), "v mismatch (multi-tile batch)"

    print("KERNEL_OK")
</pallas_src>

<mosaic_0001>
module attributes {stable_mosaic.version = 11 : i64} {
  func.func @_mlp_kernel(%arg0: i32, %arg1: memref<8x8xf32, #tpu.memory_space<vmem>>, %arg2: memref<128x8xf32, #tpu.memory_space<vmem>>, %arg3: memref<3x128x128xbf16, #tpu.memory_space<vmem>>, %arg4: memref<128x4xf32, #tpu.memory_space<vmem>>, %arg5: memref<8x128xf32, #tpu.memory_space<vmem>>, %arg6: memref<8x1xf32, #tpu.memory_space<vmem>>, %arg7: memref<8x8xf32, #tpu.memory_space<vmem>>) attributes {dimension_semantics = [#tpu.dimension_semantics<parallel>], iteration_bounds = array<i64: 1>, scalar_prefetch = 0 : i64, scratch_operands = 0 : i64, tpu.core_type = #tpu.core_type<tc>, window_params = [{transform_indices = @transform_0, window_bounds = array<i64: 8, 8>}, {pipeline_mode = #tpu.pipeline_mode<synchronous>, transform_indices = @transform_1, window_bounds = array<i64: 128, 8>}, {pipeline_mode = #tpu.pipeline_mode<synchronous>, transform_indices = @transform_2, window_bounds = array<i64: 3, 128, 128>}, {pipeline_mode = #tpu.pipeline_mode<synchronous>, transform_indices = @transform_3, window_bounds = array<i64: 128, 4>}, {pipeline_mode = #tpu.pipeline_mode<synchronous>, transform_indices = @transform_4, window_bounds = array<i64: 8, 128>}, {pipeline_mode = #tpu.pipeline_mode<synchronous>, transform_indices = @transform_5, window_bounds = array<i64: 8, 1>}, {transform_indices = @transform_6, window_bounds = array<i64: 8, 8>}]} {
    %c0 = arith.constant 0 : index
    %c0_0 = arith.constant 0 : index
    %0 = vector.load %arg2[%c0, %c0_0] : memref<128x8xf32, #tpu.memory_space<vmem>>, vector<128x8xf32>
    %c0_1 = arith.constant 0 : index
    %c0_2 = arith.constant 0 : index
    %1 = vector.load %arg1[%c0_1, %c0_2] : memref<8x8xf32, #tpu.memory_space<vmem>>, vector<8x8xf32>
    %cst = arith.constant dense<0.000000e+00> : vector<128x8xf32>
    %2 = tpu.matmul %0, %1, %cst {dimension_numbers = #tpu.dot_dimension_numbers<[1], [0], [0], [1], [0, 0, 1, 1], [], []>} : vector<128x8xf32>, vector<8x8xf32>, vector<128x8xf32> -> vector<128x8xf32>
    %c0_3 = arith.constant 0 : index
    %c0_4 = arith.constant 0 : index
    %3 = vector.load %arg4[%c0_3, %c0_4] : memref<128x4xf32, #tpu.memory_space<vmem>>, vector<128x1xf32>
    %4 = vector.broadcast %3 : vector<128x1xf32> to vector<128x8xf32>
    %5 = arith.addf %2, %4 : vector<128x8xf32>
    %6 = math.tanh %5 : vector<128x8xf32>
    %c0_5 = arith.constant 0 : index
    %c0_6 = arith.constant 0 : index
    %c0_7 = arith.constant 0 : index
    %7 = vector.load %arg3[%c0_5, %c0_6, %c0_7] : memref<3x128x128xbf16, #tpu.memory_space<vmem>>, vector<1x128x128xbf16>
    %8 = vector.shape_cast %7 : vector<1x128x128xbf16> to vector<128x128xbf16>
    %9 = arith.truncf %6 : vector<128x8xf32> to vector<128x8xbf16>
    %cst_8 = arith.constant dense<0.000000e+00> : vector<128x8xf32>
    %10 = tpu.matmul %8, %9, %cst_8 {dimension_numbers = #tpu.dot_dimension_numbers<[1], [0], [0], [1], [0, 0, 1, 1], [], []>} : vector<128x128xbf16>, vector<128x8xbf16>, vector<128x8xf32> -> vector<128x8xf32>
    %c0_9 = arith.constant 0 : index
    %c1 = arith.constant 1 : index
    %11 = vector.load %arg4[%c0_9, %c1] : memref<128x4xf32, #tpu.memory_space<vmem>>, vector<128x1xf32>
    %12 = vector.broadcast %11 : vector<128x1xf32> to vector<128x8xf32>
    %13 = arith.addf %10, %12 : vector<128x8xf32>
    %14 = math.tanh %13 : vector<128x8xf32>
    %c1_10 = arith.constant 1 : index
    %c0_11 = arith.constant 0 : index
    %c0_12 = arith.constant 0 : index
    %15 = vector.load %arg3[%c1_10, %c0_11, %c0_12] : memref<3x128x128xbf16, #tpu.memory_space<vmem>>, vector<1x128x128xbf16>
    %16 = vector.shape_cast %15 : vector<1x128x128xbf16> to vector<128x128xbf16>
    %17 = arith.truncf %14 : vector<128x8xf32> to vector<128x8xbf16>
    %cst_13 = arith.constant dense<0.000000e+00> : vector<128x8xf32>
    %18 = tpu.matmul %16, %17, %cst_13 {dimension_numbers = #tpu.dot_dimension_numbers<[1], [0], [0], [1], [0, 0, 1, 1], [], []>} : vector<128x128xbf16>, vector<128x8xbf16>, vector<128x8xf32> -> vector<128x8xf32>
    %c0_14 = arith.constant 0 : index
    %c2 = arith.constant 2 : index
    %19 = vector.load %arg4[%c0_14, %c2] : memref<128x4xf32, #tpu.memory_space<vmem>>, vector<128x1xf32>
    %20 = vector.broadcast %19 : vector<128x1xf32> to vector<128x8xf32>
    %21 = arith.addf %18, %20 : vector<128x8xf32>
    %22 = math.tanh %21 : vector<128x8xf32>
    %c2_15 = arith.constant 2 : index
    %c0_16 = arith.constant 0 : index
    %c0_17 = arith.constant 0 : index
    %23 = vector.load %arg3[%c2_15, %c0_16, %c0_17] : memref<3x128x128xbf16, #tpu.memory_space<vmem>>, vector<1x128x128xbf16>
    %24 = vector.shape_cast %23 : vector<1x128x128xbf16> to vector<128x128xbf16>
    %25 = arith.truncf %22 : vector<128x8xf32> to vector<128x8xbf16>
    %cst_18 = arith.constant dense<0.000000e+00> : vector<128x8xf32>
    %26 = tpu.matmul %24, %25, %cst_18 {dimension_numbers = #tpu.dot_dimension_numbers<[1], [0], [0], [1], [0, 0, 1, 1], [], []>} : vector<128x128xbf16>, vector<128x8xbf16>, vector<128x8xf32> -> vector<128x8xf32>
    %c0_19 = arith.constant 0 : index
    %c3 = arith.constant 3 : index
    %27 = vector.load %arg4[%c0_19, %c3] : memref<128x4xf32, #tpu.memory_space<vmem>>, vector<128x1xf32>
    %28 = vector.broadcast %27 : vector<128x1xf32> to vector<128x8xf32>
    %29 = arith.addf %26, %28 : vector<128x8xf32>
    %30 = math.tanh %29 : vector<128x8xf32>
    %c0_20 = arith.constant 0 : index
    %c0_21 = arith.constant 0 : index
    %31 = vector.load %arg5[%c0_20, %c0_21] : memref<8x128xf32, #tpu.memory_space<vmem>>, vector<8x128xf32>
    %cst_22 = arith.constant dense<0.000000e+00> : vector<8x8xf32>
    %32 = tpu.matmul %31, %30, %cst_22 {dimension_numbers = #tpu.dot_dimension_numbers<[1], [0], [0], [1], [0, 0, 1, 1], [], []>} : vector<8x128xf32>, vector<128x8xf32>, vector<8x8xf32> -> vector<8x8xf32>
    %c0_23 = arith.constant 0 : index
    %c0_24 = arith.constant 0 : index
    %33 = vector.load %arg6[%c0_23, %c0_24] : memref<8x1xf32, #tpu.memory_space<vmem>>, vector<8x1xf32>
    %34 = vector.broadcast %33 : vector<8x1xf32> to vector<8x8xf32>
    %35 = arith.addf %32, %34 : vector<8x8xf32>
    %c0_25 = arith.constant 0 : index
    %c0_26 = arith.constant 0 : index
    %36 = vector.load %arg7[%c0_25, %c0_26] : memref<8x8xf32, #tpu.memory_space<vmem>>, vector<8x8xf32>
    tpu.vector_store %arg7[%c0_25, %c0_26], %35 {strides = array<i32>} : memref<8x8xf32, #tpu.memory_space<vmem>>, vector<8x8xf32>,
    return
  }
  func.func @transform_0(%arg0: i32) -> (i32, i32) {
    %c0_i32 = arith.constant 0 : i32
    %c0_i32_0 = arith.constant 0 : i32
    return %c0_i32, %arg0 : i32, i32
  }
  func.func @transform_1(%arg0: i32) -> (i32, i32) {
    %c0_i32 = arith.constant 0 : i32
    %c0_i32_0 = arith.constant 0 : i32
    %c0_i32_1 = arith.constant 0 : i32
    return %c0_i32, %c0_i32_0 : i32, i32
  }
  func.func @transform_2(%arg0: i32) -> (i32, i32, i32) {
    %c0_i32 = arith.constant 0 : i32
    %c0_i32_0 = arith.constant 0 : i32
    %c0_i32_1 = arith.constant 0 : i32
    %c0_i32_2 = arith.constant 0 : i32
    return %c0_i32, %c0_i32_0, %c0_i32_1 : i32, i32, i32
  }
  func.func @transform_3(%arg0: i32) -> (i32, i32) {
    %c0_i32 = arith.constant 0 : i32
    %c0_i32_0 = arith.constant 0 : i32
    %c0_i32_1 = arith.constant 0 : i32
    return %c0_i32, %c0_i32_0 : i32, i32
  }
  func.func @transform_4(%arg0: i32) -> (i32, i32) {
    %c0_i32 = arith.constant 0 : i32
    %c0_i32_0 = arith.constant 0 : i32
    %c0_i32_1 = arith.constant 0 : i32
    return %c0_i32, %c0_i32_0 : i32, i32
  }
  func.func @transform_5(%arg0: i32) -> (i32, i32) {
    %c0_i32 = arith.constant 0 : i32
    %c0_i32_0 = arith.constant 0 : i32
    %c0_i32_1 = arith.constant 0 : i32
    return %c0_i32, %c0_i32_0 : i32, i32
  }
  func.func @transform_6(%arg0: i32) -> (i32, i32) {
    %c0_i32 = arith.constant 0 : i32
    %c0_i32_0 = arith.constant 0 : i32
    return %c0_i32, %arg0 : i32, i32
  }
}

</mosaic_0001>

<llo_original>
// kernel: gray_scott_pinn_forward.1
$region0: #{gray_scott_pinn_forward.1}
  #allocation0 [shape = 'u32[]', space=smem, size = 0x4, offset = 0x4, fixed_abs, tag = 'smem constant byte address 0x4 - core index']
  #allocation1 [shape = 'u32[144,128]{1,0:T(1,128)}', space=vmem, size = 0x12000, scoped, tag = 'internal scratch']
  %s0 = inlined_call_operand.vmem [shape: f32[8,8], index: 0, kind: input, shape index: {}]
  %s1 = inlined_call_operand.vmem [shape: f32[128,8], index: 1, kind: input, shape index: {}]
  %s2 = inlined_call_operand.vmem [shape: bf16[3,128,128], index: 2, kind: input, shape index: {}]
  %s3 = inlined_call_operand.vmem [shape: f32[128,4], index: 3, kind: input, shape index: {}]
  %s4 = inlined_call_operand.vmem [shape: f32[8,128], index: 4, kind: input, shape index: {}]
  %s5 = inlined_call_operand.vmem [shape: f32[8,1], index: 5, kind: input, shape index: {}]
  %s6 = inlined_call_operand.vmem [shape: f32[8,8], index: 6, kind: output, shape index: {}]
  %s7 = sld [smem:[#allocation0]]
  $region34: #{gray_scott_pinn_forward.1} parent=0
    _
  %s9 = ssub.s32 1, %s7
  %s10 = scalar_select 0, %s9, %s7
  // Predicated region
  $region2: #{gray_scott_pinn_forward.1} parent=0 // pred_check
    _
  $region3: #{gray_scott_pinn_forward.1} parent=0 // pred_check_branch
    %12 = sbr.rel (0) target = $region5
  $region4: #{gray_scott_pinn_forward.1} parent=0 // pred_region
    _
  $region5: #{gray_scott_pinn_forward.1} parent=0 // pred_fallthru
    _
  // Predicated region
  $region6: #{gray_scott_pinn_forward.1} parent=0 // pred_check
    _
  $region7: #{gray_scott_pinn_forward.1} parent=0 // pred_check_branch
    %14 = sbr.rel (0) target = $region9
  $region8: #{gray_scott_pinn_forward.1} parent=0 // pred_region
    _
  $region9: #{gray_scott_pinn_forward.1} parent=0 // pred_fallthru
    _
  // Predicated region
  $region10: #{gray_scott_pinn_forward.1} parent=0 // pred_check
    _
  $region11: #{gray_scott_pinn_forward.1} parent=0 // pred_check_branch
    %16 = sbr.rel (0) target = $region13
  $region12: #{gray_scott_pinn_forward.1} parent=0 // pred_region
    _
  $region13: #{gray_scott_pinn_forward.1} parent=0 // pred_fallthru
    _
  // Predicated region
  $region14: #{gray_scott_pinn_forward.1} parent=0 // pred_check
    _
  $region15: #{gray_scott_pinn_forward.1} parent=0 // pred_check_branch
    %18 = sbr.rel (0) target = $region17
  $region16: #{gray_scott_pinn_forward.1} parent=0 // pred_region
    _
  $region17: #{gray_scott_pinn_forward.1} parent=0 // pred_fallthru
    _
  // Predicated region
  $region18: #{gray_scott_pinn_forward.1} parent=0 // pred_check
    _
  $region19: #{gray_scott_pinn_forward.1} parent=0 // pred_check_branch
    %20 = sbr.rel (0) target = $region21
  $region20: #{gray_scott_pinn_forward.1} parent=0 // pred_region
    _
  $region21: #{gray_scott_pinn_forward.1} parent=0 // pred_fallthru
    _
  // Predicated region
  $region22: #{gray_scott_pinn_forward.1} parent=0 // pred_check
    _
  $region23: #{gray_scott_pinn_forward.1} parent=0 // pred_check_branch
    %22 = sbr.rel (0) target = $region25
  $region24: #{gray_scott_pinn_forward.1} parent=0 // pred_region
    _
  $region25: #{gray_scott_pinn_forward.1} parent=0 // pred_fallthru
    _
  %v24 = vld [vmem:[%s1] sm:$0xff]
  %v25 = vld [vmem:[%s1 + $0x8] sm:$0xff]
  %v26 = vld [vmem:[%s1 + $0x10] sm:$0xff]
  %v27 = vld [vmem:[%s1 + $0x18] sm:$0xff]
  %v28 = vld [vmem:[%s1 + $0x20] sm:$0xff]
  %v29 = vld [vmem:[%s1 + $0x28] sm:$0xff]
  %v30 = vld [vmem:[%s1 + $0x30] sm:$0xff]
  %v31 = vld [vmem:[%s1 + $0x38] sm:$0xff]
  %v32 = vld [vmem:[%s1 + $0x40] sm:$0xff]
  %v33 = vld [vmem:[%s1 + $0x48] sm:$0xff]
  %v34 = vld [vmem:[%s1 + $0x50] sm:$0xff]
  %v35 = vld [vmem:[%s1 + $0x58] sm:$0xff]
  %v36 = vld [vmem:[%s1 + $0x60] sm:$0xff]
  %v37 = vld [vmem:[%s1 + $0x68] sm:$0xff]
  %v38 = vld [vmem:[%s1 + $0x70] sm:$0xff]
  %v39 = vld [vmem:[%s1 + $0x78] sm:$0xff]
  %v40 = vld [vmem:[%s0] sm:$0xff]
  %v41 = vld [vmem:[%s3] sm:$0xff]
  %v42 = vld [vmem:[%s3 + $0x8] sm:$0xff]
  %v43 = vld [vmem:[%s3 + $0x10] sm:$0xff]
  %v44 = vld [vmem:[%s3 + $0x18] sm:$0xff]
  %v45 = vld [vmem:[%s3 + $0x20] sm:$0xff]
  %v46 = vld [vmem:[%s3 + $0x28] sm:$0xff]
  %v47 = vld [vmem:[%s3 + $0x30] sm:$0xff]
  %v48 = vld [vmem:[%s3 + $0x38] sm:$0xff]
  %v49 = vld [vmem:[%s3 + $0x40] sm:$0xff]
  %v50 = vld [vmem:[%s3 + $0x48] sm:$0xff]
  %v51 = vld [vmem:[%s3 + $0x50] sm:$0xff]
  %v52 = vld [vmem:[%s3 + $0x58] sm:$0xff]
  %v53 = vld [vmem:[%s3 + $0x60] sm:$0xff]
  %v54 = vld [vmem:[%s3 + $0x68] sm:$0xff]
  %v55 = vld [vmem:[%s3 + $0x70] sm:$0xff]
  %v56 = vld [vmem:[%s3 + $0x78] sm:$0xff]
  %58 = vset.pattern.permute.xlu0 0
  %59 = vperm.xlu0 %58, %v41
  %v60 = vpop.permute.xlu0 %59
  %63 = vset.pattern.permute.xlu0 0
  %64 = vperm.xlu0 %63, %v42
  %v65 = vpop.permute.xlu0 %64
  %68 = vset.pattern.permute.xlu0 0
  %69 = vperm.xlu0 %68, %v43
  %v70 = vpop.permute.xlu0 %69
  %73 = vset.pattern.permute.xlu0 0
  %74 = vperm.xlu0 %73, %v44
  %v75 = vpop.permute.xlu0 %74
  %78 = vset.pattern.permute.xlu0 0
  %79 = vperm.xlu0 %78, %v45
  %v80 = vpop.permute.xlu0 %79
  %83 = vset.pattern.permute.xlu0 0
  %84 = vperm.xlu0 %83, %v46
  %v85 = vpop.permute.xlu0 %84
  %88 = vset.pattern.permute.xlu0 0
  %89 = vperm.xlu0 %88, %v47
  %v90 = vpop.permute.xlu0 %89
  %93 = vset.pattern.permute.xlu0 0
  %94 = vperm.xlu0 %93, %v48
  %v95 = vpop.permute.xlu0 %94
  %98 = vset.pattern.permute.xlu0 0
  %99 = vperm.xlu0 %98, %v49
  %v100 = vpop.permute.xlu0 %99
  %103 = vset.pattern.permute.xlu0 0
  %104 = vperm.xlu0 %103, %v50
  %v105 = vpop.permute.xlu0 %104
  %108 = vset.pattern.permute.xlu0 0
  %109 = vperm.xlu0 %108, %v51
  %v110 = vpop.permute.xlu0 %109
  %113 = vset.pattern.permute.xlu0 0
  %114 = vperm.xlu0 %113, %v52
  %v115 = vpop.permute.xlu0 %114
  %118 = vset.pattern.permute.xlu0 0
  %119 = vperm.xlu0 %118, %v53
  %v120 = vpop.permute.xlu0 %119
  %123 = vset.pattern.permute.xlu0 0
  %124 = vperm.xlu0 %123, %v54
  %v125 = vpop.permute.xlu0 %124
  %128 = vset.pattern.permute.xlu0 0
  %129 = vperm.xlu0 %128, %v55
  %v130 = vpop.permute.xlu0 %129
  %133 = vset.pattern.permute.xlu0 0
  %134 = vperm.xlu0 %133, %v56
  %v135 = vpop.permute.xlu0 %134
  %vm137 = vcmask 64512
  %v139 = vsel %vm137, %v24, 0
  %v142 = vsel %vm137, %v25, 0
  %v145 = vsel %vm137, %v26, 0
  %v148 = vsel %vm137, %v27, 0
  %v151 = vsel %vm137, %v28, 0
  %v154 = vsel %vm137, %v29, 0
  %v157 = vsel %vm137, %v30, 0
  %v160 = vsel %vm137, %v31, 0
  %v163 = vsel %vm137, %v32, 0
  %v166 = vsel %vm137, %v33, 0
  %v169 = vsel %vm137, %v34, 0
  %v172 = vsel %vm137, %v35, 0
  %v175 = vsel %vm137, %v36, 0
  %v178 = vsel %vm137, %v37, 0
  %v181 = vsel %vm137, %v38, 0
  %v184 = vsel %vm137, %v39, 0
  %186 = vmatprep.subr.mxu0 0.0
  %187 = vmatpush1.msra.mxu0 %v40
  %188 = vmatprep.subr.mxu0 0.0
  %189 = vmatpush1.msra.mxu0 0.0
  %190 = vmatprep.subr.mxu0 0.0
  %191 = vmatpush1.msra.mxu0 0.0
  %192 = vmatprep.subr.mxu0 0.0
  %193 = vmatpush1.msra.mxu0 0.0
  %194 = vmatprep.subr.mxu0 0.0
  %195 = vmatpush1.msra.mxu0 0.0
  %196 = vmatprep.subr.mxu0 0.0
  %197 = vmatpush1.msra.mxu0 0.0
  %198 = vmatprep.subr.mxu0 0.0
  %199 = vmatpush1.msra.mxu0 0.0
  %200 = vmatprep.subr.mxu0 0.0
  %201 = vmatpush1.msra.mxu0 0.0
  %202 = vmatprep.subr.mxu0 0.0
  %203 = vmatpush1.msra.mxu0 0.0
  %204 = vmatprep.subr.mxu0 0.0
  %205 = vmatpush1.msra.mxu0 0.0
  %206 = vmatprep.subr.mxu0 0.0
  %207 = vmatpush1.msra.mxu0 0.0
  %208 = vmatprep.subr.mxu0 0.0
  %209 = vmatpush1.msra.mxu0 0.0
  %210 = vmatprep.subr.mxu0 0.0
  %211 = vmatpush1.msra.mxu0 0.0
  %212 = vmatprep.subr.mxu0 0.0
  %213 = vmatpush1.msra.mxu0 0.0
  %214 = vmatprep.subr.mxu0 0.0
  %215 = vmatpush1.msra.mxu0 0.0
  %216 = vmatprep.subr.mxu0 0.0
  %217 = vmatpush1.msra.mxu0 0.0
  %218 = vmatprep.subr.mxu0 0.0
  %219 = vmatpush1.msra.mxu0 0.0
  %220 = vmatprep.subr.mxu0 0.0
  %221 = vmatpush1.msra.mxu0 0.0
  %222 = vmatprep.subr.mxu0 0.0
  %223 = vmatpush1.msra.mxu0 0.0
  %224 = vmatprep.subr.mxu0 0.0
  %225 = vmatpush1.msra.mxu0 0.0
  %226 = vmatprep.subr.mxu0 0.0
  %227 = vmatpush1.msra.mxu0 0.0
  %228 = vmatprep.subr.mxu0 0.0
  %229 = vmatpush1.msra.mxu0 0.0
  %230 = vmatprep.subr.mxu0 0.0
  %231 = vmatpush1.msra.mxu0 0.0
  %232 = vmatprep.subr.mxu0 0.0
  %233 = vmatpush1.msra.mxu0 0.0
  %234 = vmatprep.subr.mxu0 0.0
  %235 = vmatpush1.msra.mxu0 0.0
  %236 = vmatprep.subr.mxu0 0.0
  %237 = vmatpush1.msra.mxu0 0.0
  %238 = vmatprep.subr.mxu0 0.0
  %239 = vmatpush1.msra.mxu0 0.0
  %240 = vmatprep.subr.mxu0 0.0
  %241 = vmatpush1.msra.mxu0 0.0
  %242 = vmatprep.subr.mxu0 0.0
  %243 = vmatpush1.msra.mxu0 0.0
  %244 = vmatprep.subr.mxu0 0.0
  %245 = vmatpush1.msra.mxu0 0.0
  %246 = vmatprep.subr.mxu0 0.0
  %247 = vmatpush1.msra.mxu0 0.0
  %248 = vmatprep.subr.mxu0 0.0
  %249 = vmatpush1.msra.mxu0 0.0
  %250 = vmatprep.mubr.f32.mxu0 0.0
  %251 = vmatmul.mubr.f32.gmra.mrb[0].mxu0 %v139
  %v252 = vpop.f32.mrb[0].mxu0
  %v253 = vadd.f32 %v60, %v252
  %v254 = vpop.f32.mrb[0].mxu0
  %255 = vmatprep.mubr.f32.mxu0 0.0
  %256 = vmatmul.mubr.f32.gmra.mrb[0].mxu0 %v142
  %v257 = vpop.f32.mrb[0].mxu0
  %v258 = vadd.f32 %v65, %v257
  %v259 = vpop.f32.mrb[0].mxu0
  %260 = vmatprep.mubr.f32.mxu0 0.0
  %261 = vmatmul.mubr.f32.gmra.mrb[0].mxu0 %v145
  %v262 = vpop.f32.mrb[0].mxu0
  %v263 = vadd.f32 %v70, %v262
  %v264 = vpop.f32.mrb[0].mxu0
  %265 = vmatprep.mubr.f32.mxu0 0.0
  %266 = vmatmul.mubr.f32.gmra.mrb[0].mxu0 %v148
  %v267 = vpop.f32.mrb[0].mxu0
  %v268 = vadd.f32 %v75, %v267
  %v269 = vpop.f32.mrb[0].mxu0
  %270 = vmatprep.mubr.f32.mxu0 0.0
  %271 = vmatmul.mubr.f32.gmra.mrb[0].mxu0 %v151
  %v272 = vpop.f32.mrb[0].mxu0
  %v273 = vadd.f32 %v80, %v272
  %v274 = vpop.f32.mrb[0].mxu0
  %275 = vmatprep.mubr.f32.mxu0 0.0
  %276 = vmatmul.mubr.f32.gmra.mrb[0].mxu0 %v154
  %v277 = vpop.f32.mrb[0].mxu0
  %v278 = vadd.f32 %v85, %v277
  %v279 = vpop.f32.mrb[0].mxu0
  %280 = vmatprep.mubr.f32.mxu0 0.0
  %281 = vmatmul.mubr.f32.gmra.mrb[0].mxu0 %v157
  %v282 = vpop.f32.mrb[0].mxu0
  %v283 = vadd.f32 %v90, %v282
  %v284 = vpop.f32.mrb[0].mxu0
  %285 = vmatprep.mubr.f32.mxu0 0.0
  %286 = vmatmul.mubr.f32.gmra.mrb[0].mxu0 %v160
  %v287 = vpop.f32.mrb[0].mxu0
  %v288 = vadd.f32 %v95, %v287
  %v289 = vpop.f32.mrb[0].mxu0
  %290 = vmatprep.mubr.f32.mxu0 0.0
  %291 = vmatmul.mubr.f32.gmra.mrb[0].mxu0 %v163
  %v292 = vpop.f32.mrb[0].mxu0
  %v293 = vadd.f32 %v100, %v292
  %v294 = vpop.f32.mrb[0].mxu0
  %295 = vmatprep.mubr.f32.mxu0 0.0
  %296 = vmatmul.mubr.f32.gmra.mrb[0].mxu0 %v166
  %v297 = vpop.f32.mrb[0].mxu0
  %v298 = vadd.f32 %v105, %v297
  %v299 = vpop.f32.mrb[0].mxu0
  %300 = vmatprep.mubr.f32.mxu0 0.0
  %301 = vmatmul.mubr.f32.gmra.mrb[0].mxu0 %v169
  %v302 = vpop.f32.mrb[0].mxu0
  %v303 = vadd.f32 %v110, %v302
  %v304 = vpop.f32.mrb[0].mxu0
  %305 = vmatprep.mubr.f32.mxu0 0.0
  %306 = vmatmul.mubr.f32.gmra.mrb[0].mxu0 %v172
  %v307 = vpop.f32.mrb[0].mxu0
  %v308 = vadd.f32 %v115, %v307
  %v309 = vpop.f32.mrb[0].mxu0
  %310 = vmatprep.mubr.f32.mxu0 0.0
  %311 = vmatmul.mubr.f32.gmra.mrb[0].mxu0 %v175
  %v312 = vpop.f32.mrb[0].mxu0
  %v313 = vadd.f32 %v120, %v312
  %v314 = vpop.f32.mrb[0].mxu0
  %315 = vmatprep.mubr.f32.mxu0 0.0
  %316 = vmatmul.mubr.f32.gmra.mrb[0].mxu0 %v178
  %v317 = vpop.f32.mrb[0].mxu0
  %v318 = vadd.f32 %v125, %v317
  %v319 = vpop.f32.mrb[0].mxu0
  %320 = vmatprep.mubr.f32.mxu0 0.0
  %321 = vmatmul.mubr.f32.gmra.mrb[0].mxu0 %v181
  %v322 = vpop.f32.mrb[0].mxu0
  %v323 = vadd.f32 %v130, %v322
  %v324 = vpop.f32.mrb[0].mxu0
  %325 = vmatprep.mubr.f32.mxu0 0.0
  %326 = vmatmul.mubr.f32.gmra.mrb[0].mxu0 %v184
  %v327 = vpop.f32.mrb[0].mxu0
  %v328 = vadd.f32 %v135, %v327
  %v329 = vpop.f32.mrb[0].mxu0
  %330 = vdwg.mxu0
  %v331 = vtanh.pop %v253
  %v332 = vtanh.pop %v258
  %v333 = vtanh.pop %v263
  %v334 = vtanh.pop %v268
  %v335 = vtanh.pop %v273
  %v336 = vtanh.pop %v278
  %v337 = vtanh.pop %v283
  %v338 = vtanh.pop %v288
  %v339 = vtanh.pop %v293
  %v340 = vtanh.pop %v298
  %v341 = vtanh.pop %v303
  %v342 = vtanh.pop %v308
  %v343 = vtanh.pop %v313
  %v344 = vtanh.pop %v318
  %v345 = vtanh.pop %v323
  %v346 = vtanh.pop %v328
  %v347 = vld [vmem:[%s2] sm:$0xf]
  %v348 = vld [vmem:[%s2 + $0x4] sm:$0xf]
  %v349 = vld [vmem:[%s2 + $0x8] sm:$0xf]
  %v350 = vld [vmem:[%s2 + $0xc] sm:$0xf]
  %v351 = vld [vmem:[%s2 + $0x10] sm:$0xf]
  %v352 = vld [vmem:[%s2 + $0x14] sm:$0xf]
  %v353 = vld [vmem:[%s2 + $0x18] sm:$0xf]
  %v354 = vld [vmem:[%s2 + $0x1c] sm:$0xf]
  %v355 = vld [vmem:[%s2 + $0x20] sm:$0xf]
  %v356 = vld [vmem:[%s2 + $0x24] sm:$0xf]
  %v357 = vld [vmem:[%s2 + $0x28] sm:$0xf]
  %v358 = vld [vmem:[%s2 + $0x2c] sm:$0xf]
  %v359 = vld [vmem:[%s2 + $0x30] sm:$0xf]
  %v360 = vld [vmem:[%s2 + $0x34] sm:$0xf]
  %v361 = vld [vmem:[%s2 + $0x38] sm:$0xf]
  %v362 = vld [vmem:[%s2 + $0x3c] sm:$0xf]
  %v363 = vpack.c.bf16 %v332, %v331
  %v364 = vpack.c.bf16 %v334, %v333
  %v365 = vpack.c.bf16 %v336, %v335
  %v366 = vpack.c.bf16 %v338, %v337
  %v367 = vpack.c.bf16 %v340, %v339
  %v368 = vpack.c.bf16 %v342, %v341
  %v369 = vpack.c.bf16 %v344, %v343
  %v370 = vpack.c.bf16 %v346, %v345
  %371 = vset.pattern.permute.xlu0 1
  %372 = vperm.xlu0 %371, %v41
  %v373 = vpop.permute.xlu0 %372
  %375 = vset.pattern.permute.xlu0 1
  %376 = vperm.xlu0 %375, %v42
  %v377 = vpop.permute.xlu0 %376
  %379 = vset.pattern.permute.xlu0 1
  %380 = vperm.xlu0 %379, %v43
  %v381 = vpop.permute.xlu0 %380
  %383 = vset.pattern.permute.xlu0 1
  %384 = vperm.xlu0 %383, %v44
  %v385 = vpop.permute.xlu0 %384
  %387 = vset.pattern.permute.xlu0 1
  %388 = vperm.xlu0 %387, %v45
  %v389 = vpop.permute.xlu0 %388
  %391 = vset.pattern.permute.xlu0 1
  %392 = vperm.xlu0 %391, %v46
  %v393 = vpop.permute.xlu0 %392
  %395 = vset.pattern.permute.xlu0 1
  %396 = vperm.xlu0 %395, %v47
  %v397 = vpop.permute.xlu0 %396
  %399 = vset.pattern.permute.xlu0 1
  %400 = vperm.xlu0 %399, %v48
  %v401 = vpop.permute.xlu0 %400
  %403 = vset.pattern.permute.xlu0 1
  %404 = vperm.xlu0 %403, %v49
  %v405 = vpop.permute.xlu0 %404
  %407 = vset.pattern.permute.xlu0 1
  %408 = vperm.xlu0 %407, %v50
  %v409 = vpop.permute.xlu0 %408
  %411 = vset.pattern.permute.xlu0 1
  %412 = vperm.xlu0 %411, %v51
  %v413 = vpop.permute.xlu0 %412
  %415 = vset.pattern.permute.xlu0 1
  %416 = vperm.xlu0 %415, %v52
  %v417 = vpop.permute.xlu0 %416
  %419 = vset.pattern.permute.xlu0 1
  %420 = vperm.xlu0 %419, %v53
  %v421 = vpop.permute.xlu0 %420
  %423 = vset.pattern.permute.xlu0 1
  %424 = vperm.xlu0 %423, %v54
  %v425 = vpop.permute.xlu0 %424
  %427 = vset.pattern.permute.xlu0 1
  %428 = vperm.xlu0 %427, %v55
  %v429 = vpop.permute.xlu0 %428
  %431 = vset.pattern.permute.xlu0 1
  %432 = vperm.xlu0 %431, %v56
  %v433 = vpop.permute.xlu0 %432
  %v451 = vunpack.c.l.b16 %v347
  %v452 = vunpack.c.l.b16 %v348
  %v453 = vunpack.c.l.b16 %v349
  %v454 = vunpack.c.l.b16 %v350
  %v455 = vunpack.c.l.b16 %v351
  %v456 = vunpack.c.l.b16 %v352
  %v457 = vunpack.c.l.b16 %v353
  %v458 = vunpack.c.l.b16 %v354
  %v459 = vunpack.c.l.b16 %v355
  %v460 = vunpack.c.l.b16 %v356
  %v461 = vunpack.c.l.b16 %v357
  %v462 = vunpack.c.l.b16 %v358
  %v463 = vunpack.c.l.b16 %v359
  %v464 = vunpack.c.l.b16 %v360
  %v465 = vunpack.c.l.b16 %v361
  %v466 = vunpack.c.l.b16 %v362
  %v467 = vpack.c.b16 %v452, %v451
  %v468 = vpack.c.b16 %v454, %v453
  %v469 = vpack.c.b16 %v456, %v455
  %v470 = vpack.c.b16 %v458, %v457
  %v471 = vpack.c.b16 %v460, %v459
  %v472 = vpack.c.b16 %v462, %v461
  %v473 = vpack.c.b16 %v464, %v463
  %v474 = vpack.c.b16 %v466, %v465
  %483 = vmatprep.subr.bf16.mxu0 0
  %484 = vmatpush1.bf16.msra.mxu0 %v363
  %485 = vmatprep.subr.bf16.mxu0 0
  %486 = vmatpush1.bf16.msra.mxu0 %v364
  %487 = vmatprep.subr.bf16.mxu0 0
  %488 = vmatpush1.bf16.msra.mxu0 %v365
  %489 = vmatprep.subr.bf16.mxu0 0
  %490 = vmatpush1.bf16.msra.mxu0 %v366
  %491 = vmatprep.subr.bf16.mxu0 0
  %492 = vmatpush1.bf16.msra.mxu0 %v367
  %493 = vmatprep.subr.bf16.mxu0 0
  %494 = vmatpush1.bf16.msra.mxu0 %v368
  %495 = vmatprep.subr.bf16.mxu0 0
  %496 = vmatpush1.bf16.msra.mxu0 %v369
  %497 = vmatprep.subr.bf16.mxu0 0
  %498 = vmatpush1.bf16.msra.mxu0 %v370
  %499 = vmatprep.subr.bf16.mxu0 0
  %500 = vmatpush1.bf16.msra.mxu0 0
  %501 = vmatprep.subr.bf16.mxu0 0
  %502 = vmatpush1.bf16.msra.mxu0 0
  %503 = vmatprep.subr.bf16.mxu0 0
  %504 = vmatpush1.bf16.msra.mxu0 0
  %505 = vmatprep.subr.bf16.mxu0 0
  %506 = vmatpush1.bf16.msra.mxu0 0
  %507 = vmatprep.subr.bf16.mxu0 0
  %508 = vmatpush1.bf16.msra.mxu0 0
  %509 = vmatprep.subr.bf16.mxu0 0
  %510 = vmatpush1.bf16.msra.mxu0 0
  %511 = vmatprep.subr.bf16.mxu0 0
  %512 = vmatpush1.bf16.msra.mxu0 0
  %513 = vmatprep.subr.bf16.mxu0 0
  %514 = vmatpush1.bf16.msra.mxu0 0
  %515 = vmatprep.mubr.bf16.mxu0 0
  %516 = vmatmul.mubr.bf16.gmra.mrb[0].mxu0 %v467
  %v517 = vpop.f32.mrb[0].mxu0
  %v518 = vadd.f32 %v373, %v517
  %v519 = vpop.f32.mrb[0].mxu0
  %v520 = vpop.f32.mrb[0].mxu0
  %v521 = vadd.f32 %v377, %v520
  %v522 = vpop.f32.mrb[0].mxu0
  %523 = vmatprep.mubr.bf16.mxu0 0
  %524 = vmatmul.mubr.bf16.gmra.mrb[0].mxu0 %v468
  %v525 = vpop.f32.mrb[0].mxu0
  %v526 = vadd.f32 %v381, %v525
  %v527 = vpop.f32.mrb[0].mxu0
  %v528 = vpop.f32.mrb[0].mxu0
  %v529 = vadd.f32 %v385, %v528
  %v530 = vpop.f32.mrb[0].mxu0
  %531 = vmatprep.mubr.bf16.mxu0 0
  %532 = vmatmul.mubr.bf16.gmra.mrb[0].mxu0 %v469
  %v533 = vpop.f32.mrb[0].mxu0
  %v534 = vadd.f32 %v389, %v533
  %v535 = vpop.f32.mrb[0].mxu0
  %v536 = vpop.f32.mrb[0].mxu0
  %v537 = vadd.f32 %v393, %v536
  %v538 = vpop.f32.mrb[0].mxu0
  %539 = vmatprep.mubr.bf16.mxu0 0
  %540 = vmatmul.mubr.bf16.gmra.mrb[0].mxu0 %v470
  %v541 = vpop.f32.mrb[0].mxu0
  %v542 = vadd.f32 %v397, %v541
  %v543 = vpop.f32.mrb[0].mxu0
  %v544 = vpop.f32.mrb[0].mxu0
  %v545 = vadd.f32 %v401, %v544
  %v546 = vpop.f32.mrb[0].mxu0
  %547 = vmatprep.mubr.bf16.mxu0 0
  %548 = vmatmul.mubr.bf16.gmra.mrb[0].mxu0 %v471
  %v549 = vpop.f32.mrb[0].mxu0
  %v550 = vadd.f32 %v405, %v549
  %v551 = vpop.f32.mrb[0].mxu0
  %v552 = vpop.f32.mrb[0].mxu0
  %v553 = vadd.f32 %v409, %v552
  %v554 = vpop.f32.mrb[0].mxu0
  %555 = vmatprep.mubr.bf16.mxu0 0
  %556 = vmatmul.mubr.bf16.gmra.mrb[0].mxu0 %v472
  %v557 = vpop.f32.mrb[0].mxu0
  %v558 = vadd.f32 %v413, %v557
  %v559 = vpop.f32.mrb[0].mxu0
  %v560 = vpop.f32.mrb[0].mxu0
  %v561 = vadd.f32 %v417, %v560
  %v562 = vpop.f32.mrb[0].mxu0
  %563 = vmatprep.mubr.bf16.mxu0 0
  %564 = vmatmul.mubr.bf16.gmra.mrb[0].mxu0 %v473
  %v565 = vpop.f32.mrb[0].mxu0
  %v566 = vadd.f32 %v421, %v565
  %v567 = vpop.f32.mrb[0].mxu0
  %v568 = vpop.f32.mrb[0].mxu0
  %v569 = vadd.f32 %v425, %v568
  %v570 = vpop.f32.mrb[0].mxu0
  %571 = vmatprep.mubr.bf16.mxu0 0
  %572 = vmatmul.mubr.bf16.gmra.mrb[0].mxu0 %v474
  %v573 = vpop.f32.mrb[0].mxu0
  %v574 = vadd.f32 %v429, %v573
  %v575 = vpop.f32.mrb[0].mxu0
  %v576 = vpop.f32.mrb[0].mxu0
  %v577 = vadd.f32 %v433, %v576
  %v578 = vpop.f32.mrb[0].mxu0
  %579 = vdwg.mxu0
  %v580 = vtanh.pop %v518
  %v581 = vtanh.pop %v521
  %v582 = vtanh.pop %v526
  %v583 = vtanh.pop %v529
  %v584 = vtanh.pop %v534
  %v585 = vtanh.pop %v537
  %v586 = vtanh.pop %v542
  %v587 = vtanh.pop %v545
  %v588 = vtanh.pop %v550
  %v589 = vtanh.pop %v553
  %v590 = vtanh.pop %v558
  %v591 = vtanh.pop %v561
  %v592 = vtanh.pop %v566
  %v593 = vtanh.pop %v569
  %v594 = vtanh.pop %v574
  %v595 = vtanh.pop %v577
  %s596 = scalar_lea.vmem %s2, 64
  %v597 = vld [vmem:[%s596] sm:$0xf]
  %v598 = vld [vmem:[%s596 + $0x4] sm:$0xf]
  %v599 = vld [vmem:[%s596 + $0x8] sm:$0xf]
  %v600 = vld [vmem:[%s596 + $0xc] sm:$0xf]
  %v601 = vld [vmem:[%s596 + $0x10] sm:$0xf]
  %v602 = vld [vmem:[%s596 + $0x14] sm:$0xf]
  %v603 = vld [vmem:[%s596 + $0x18] sm:$0xf]
  %v604 = vld [vmem:[%s596 + $0x1c] sm:$0xf]
  %v605 = vld [vmem:[%s596 + $0x20] sm:$0xf]
  %v606 = vld [vmem:[%s596 + $0x24] sm:$0xf]
  %v607 = vld [vmem:[%s596 + $0x28] sm:$0xf]
  %v608 = vld [vmem:[%s596 + $0x2c] sm:$0xf]
  %v609 = vld [vmem:[%s596 + $0x30] sm:$0xf]
  %v610 = vld [vmem:[%s596 + $0x34] sm:$0xf]
  %v611 = vld [vmem:[%s596 + $0x38] sm:$0xf]
  %v612 = vld [vmem:[%s596 + $0x3c] sm:$0xf]
  %v613 = vpack.c.bf16 %v581, %v580
  %v614 = vpack.c.bf16 %v583, %v582
  %v615 = vpack.c.bf16 %v585, %v584
  %v616 = vpack.c.bf16 %v587, %v586
  %v617 = vpack.c.bf16 %v589, %v588
  %v618 = vpack.c.bf16 %v591, %v590
  %v619 = vpack.c.bf16 %v593, %v592
  %v620 = vpack.c.bf16 %v595, %v594
  %621 = vset.pattern.permute.xlu0 2
  %622 = vperm.xlu0 %621, %v41
  %v623 = vpop.permute.xlu0 %622
  %625 = vset.pattern.permute.xlu0 2
  %626 = vperm.xlu0 %625, %v42
  %v627 = vpop.permute.xlu0 %626
  %629 = vset.pattern.permute.xlu0 2
  %630 = vperm.xlu0 %629, %v43
  %v631 = vpop.permute.xlu0 %630
  %633 = vset.pattern.permute.xlu0 2
  %634 = vperm.xlu0 %633, %v44
  %v635 = vpop.permute.xlu0 %634
  %637 = vset.pattern.permute.xlu0 2
  %638 = vperm.xlu0 %637, %v45
  %v639 = vpop.permute.xlu0 %638
  %641 = vset.pattern.permute.xlu0 2
  %642 = vperm.xlu0 %641, %v46
  %v643 = vpop.permute.xlu0 %642
  %645 = vset.pattern.permute.xlu0 2
  %646 = vperm.xlu0 %645, %v47
  %v647 = vpop.permute.xlu0 %646
  %649 = vset.pattern.permute.xlu0 2
  %650 = vperm.xlu0 %649, %v48
  %v651 = vpop.permute.xlu0 %650
  %653 = vset.pattern.permute.xlu0 2
  %654 = vperm.xlu0 %653, %v49
  %v655 = vpop.permute.xlu0 %654
  %657 = vset.pattern.permute.xlu0 2
  %658 = vperm.xlu0 %657, %v50
  %v659 = vpop.permute.xlu0 %658
  %661 = vset.pattern.permute.xlu0 2
  %662 = vperm.xlu0 %661, %v51
  %v663 = vpop.permute.xlu0 %662
  %665 = vset.pattern.permute.xlu0 2
  %666 = vperm.xlu0 %665, %v52
  %v667 = vpop.permute.xlu0 %666
  %669 = vset.pattern.permute.xlu0 2
  %670 = vperm.xlu0 %669, %v53
  %v671 = vpop.permute.xlu0 %670
  %673 = vset.pattern.permute.xlu0 2
  %674 = vperm.xlu0 %673, %v54
  %v675 = vpop.permute.xlu0 %674
  %677 = vset.pattern.permute.xlu0 2
  %678 = vperm.xlu0 %677, %v55
  %v679 = vpop.permute.xlu0 %678
  %681 = vset.pattern.permute.xlu0 2
  %682 = vperm.xlu0 %681, %v56
  %v683 = vpop.permute.xlu0 %682
  %v701 = vunpack.c.l.b16 %v597
  %v702 = vunpack.c.l.b16 %v598
  %v703 = vunpack.c.l.b16 %v599
  %v704 = vunpack.c.l.b16 %v600
  %v705 = vunpack.c.l.b16 %v601
  %v706 = vunpack.c.l.b16 %v602
  %v707 = vunpack.c.l.b16 %v603
  %v708 = vunpack.c.l.b16 %v604
  %v709 = vunpack.c.l.b16 %v605
  %v710 = vunpack.c.l.b16 %v606
  %v711 = vunpack.c.l.b16 %v607
  %v712 = vunpack.c.l.b16 %v608
  %v713 = vunpack.c.l.b16 %v609
  %v714 = vunpack.c.l.b16 %v610
  %v715 = vunpack.c.l.b16 %v611
  %v716 = vunpack.c.l.b16 %v612
  %v717 = vpack.c.b16 %v702, %v701
  %v718 = vpack.c.b16 %v704, %v703
  %v719 = vpack.c.b16 %v706, %v705
  %v720 = vpack.c.b16 %v708, %v707
  %v721 = vpack.c.b16 %v710, %v709
  %v722 = vpack.c.b16 %v712, %v711
  %v723 = vpack.c.b16 %v714, %v713
  %v724 = vpack.c.b16 %v716, %v715
  %733 = vmatprep.subr.bf16.mxu0 0
  %734 = vmatpush1.bf16.msra.mxu0 %v613
  %735 = vmatprep.subr.bf16.mxu0 0
  %736 = vmatpush1.bf16.msra.mxu0 %v614
  %737 = vmatprep.subr.bf16.mxu0 0
  %738 = vmatpush1.bf16.msra.mxu0 %v615
  %739 = vmatprep.subr.bf16.mxu0 0
  %740 = vmatpush1.bf16.msra.mxu0 %v616
  %741 = vmatprep.subr.bf16.mxu0 0
  %742 = vmatpush1.bf16.msra.mxu0 %v617
  %743 = vmatprep.subr.bf16.mxu0 0
  %744 = vmatpush1.bf16.msra.mxu0 %v618
  %745 = vmatprep.subr.bf16.mxu0 0
  %746 = vmatpush1.bf16.msra.mxu0 %v619
  %747 = vmatprep.subr.bf16.mxu0 0
  %748 = vmatpush1.bf16.msra.mxu0 %v620
  %749 = vmatprep.subr.bf16.mxu0 0
  %750 = vmatpush1.bf16.msra.mxu0 0
  %751 = vmatprep.subr.bf16.mxu0 0
  %752 = vmatpush1.bf16.msra.mxu0 0
  %753 = vmatprep.subr.bf16.mxu0 0
  %754 = vmatpush1.bf16.msra.mxu0 0
  %755 = vmatprep.subr.bf16.mxu0 0
  %756 = vmatpush1.bf16.msra.mxu0 0
  %757 = vmatprep.subr.bf16.mxu0 0
  %758 = vmatpush1.bf16.msra.mxu0 0
  %759 = vmatprep.subr.bf16.mxu0 0
  %760 = vmatpush1.bf16.msra.mxu0 0
  %761 = vmatprep.subr.bf16.mxu0 0
  %762 = vmatpush1.bf16.msra.mxu0 0
  %763 = vmatprep.subr.bf16.mxu0 0
  %764 = vmatpush1.bf16.msra.mxu0 0
  %765 = vmatprep.mubr.bf16.mxu0 0
  %766 = vmatmul.mubr.bf16.gmra.mrb[0].mxu0 %v717
  %v767 = vpop.f32.mrb[0].mxu0
  %v768 = vadd.f32 %v623, %v767
  %v769 = vpop.f32.mrb[0].mxu0
  %v770 = vpop.f32.mrb[0].mxu0
  %v771 = vadd.f32 %v627, %v770
  %v772 = vpop.f32.mrb[0].mxu0
  %773 = vmatprep.mubr.bf16.mxu0 0
  %774 = vmatmul.mubr.bf16.gmra.mrb[0].mxu0 %v718
  %v775 = vpop.f32.mrb[0].mxu0
  %v776 = vadd.f32 %v631, %v775
  %v777 = vpop.f32.mrb[0].mxu0
  %v778 = vpop.f32.mrb[0].mxu0
  %v779 = vadd.f32 %v635, %v778
  %v780 = vpop.f32.mrb[0].mxu0
  %781 = vmatprep.mubr.bf16.mxu0 0
  %782 = vmatmul.mubr.bf16.gmra.mrb[0].mxu0 %v719
  %v783 = vpop.f32.mrb[0].mxu0
  %v784 = vadd.f32 %v639, %v783
  %v785 = vpop.f32.mrb[0].mxu0
  %v786 = vpop.f32.mrb[0].mxu0
  %v787 = vadd.f32 %v643, %v786
  %v788 = vpop.f32.mrb[0].mxu0
  %789 = vmatprep.mubr.bf16.mxu0 0
  %790 = vmatmul.mubr.bf16.gmra.mrb[0].mxu0 %v720
  %v791 = vpop.f32.mrb[0].mxu0
  %v792 = vadd.f32 %v647, %v791
  %v793 = vpop.f32.mrb[0].mxu0
  %v794 = vpop.f32.mrb[0].mxu0
  %v795 = vadd.f32 %v651, %v794
  %v796 = vpop.f32.mrb[0].mxu0
  %797 = vmatprep.mubr.bf16.mxu0 0
  %798 = vmatmul.mubr.bf16.gmra.mrb[0].mxu0 %v721
  %v799 = vpop.f32.mrb[0].mxu0
  %v800 = vadd.f32 %v655, %v799
  %v801 = vpop.f32.mrb[0].mxu0
  %v802 = vpop.f32.mrb[0].mxu0
  %v803 = vadd.f32 %v659, %v802
  %v804 = vpop.f32.mrb[0].mxu0
  %805 = vmatprep.mubr.bf16.mxu0 0
  %806 = vmatmul.mubr.bf16.gmra.mrb[0].mxu0 %v722
  %v807 = vpop.f32.mrb[0].mxu0
  %v808 = vadd.f32 %v663, %v807
  %v809 = vpop.f32.mrb[0].mxu0
  %v810 = vpop.f32.mrb[0].mxu0
  %v811 = vadd.f32 %v667, %v810
  %v812 = vpop.f32.mrb[0].mxu0
  %813 = vmatprep.mubr.bf16.mxu0 0
  %814 = vmatmul.mubr.bf16.gmra.mrb[0].mxu0 %v723
  %v815 = vpop.f32.mrb[0].mxu0
  %v816 = vadd.f32 %v671, %v815
  %v817 = vpop.f32.mrb[0].mxu0
  %v818 = vpop.f32.mrb[0].mxu0
  %v819 = vadd.f32 %v675, %v818
  %v820 = vpop.f32.mrb[0].mxu0
  %821 = vmatprep.mubr.bf16.mxu0 0
  %822 = vmatmul.mubr.bf16.gmra.mrb[0].mxu0 %v724
  %v823 = vpop.f32.mrb[0].mxu0
  %v824 = vadd.f32 %v679, %v823
  %v825 = vpop.f32.mrb[0].mxu0
  %v826 = vpop.f32.mrb[0].mxu0
  %v827 = vadd.f32 %v683, %v826
  %v828 = vpop.f32.mrb[0].mxu0
  %829 = vdwg.mxu0
  %v830 = vtanh.pop %v768
  %v831 = vtanh.pop %v771
  %v832 = vtanh.pop %v776
  %v833 = vtanh.pop %v779
  %v834 = vtanh.pop %v784
  %v835 = vtanh.pop %v787
  %v836 = vtanh.pop %v792
  %v837 = vtanh.pop %v795
  %v838 = vtanh.pop %v800
  %v839 = vtanh.pop %v803
  %v840 = vtanh.pop %v808
  %v841 = vtanh.pop %v811
  %v842 = vtanh.pop %v816
  %v843 = vtanh.pop %v819
  %v844 = vtanh.pop %v824
  %v845 = vtanh.pop %v827
  %s846 = scalar_lea.vmem %s2, 128
  %v847 = vld [vmem:[%s846] sm:$0xf]
  %v848 = vld [vmem:[%s846 + $0x4] sm:$0xf]
  %v849 = vld [vmem:[%s846 + $0x8] sm:$0xf]
  %v850 = vld [vmem:[%s846 + $0xc] sm:$0xf]
  %v851 = vld [vmem:[%s846 + $0x10] sm:$0xf]
  %v852 = vld [vmem:[%s846 + $0x14] sm:$0xf]
  %v853 = vld [vmem:[%s846 + $0x18] sm:$0xf]
  %v854 = vld [vmem:[%s846 + $0x1c] sm:$0xf]
  %v855 = vld [vmem:[%s846 + $0x20] sm:$0xf]
  %v856 = vld [vmem:[%s846 + $0x24] sm:$0xf]
  %v857 = vld [vmem:[%s846 + $0x28] sm:$0xf]
  %v858 = vld [vmem:[%s846 + $0x2c] sm:$0xf]
  %v859 = vld [vmem:[%s846 + $0x30] sm:$0xf]
  %v860 = vld [vmem:[%s846 + $0x34] sm:$0xf]
  %v861 = vld [vmem:[%s846 + $0x38] sm:$0xf]
  %v862 = vld [vmem:[%s846 + $0x3c] sm:$0xf]
  %v863 = vpack.c.bf16 %v831, %v830
  %v864 = vpack.c.bf16 %v833, %v832
  %v865 = vpack.c.bf16 %v835, %v834
  %v866 = vpack.c.bf16 %v837, %v836
  %v867 = vpack.c.bf16 %v839, %v838
  %v868 = vpack.c.bf16 %v841, %v840
  %v869 = vpack.c.bf16 %v843, %v842
  %v870 = vpack.c.bf16 %v845, %v844
  %871 = vset.pattern.permute.xlu0 3
  %872 = vperm.xlu0 %871, %v41
  %v873 = vpop.permute.xlu0 %872
  %875 = vset.pattern.permute.xlu0 3
  %876 = vperm.xlu0 %875, %v42
  %v877 = vpop.permute.xlu0 %876
  %879 = vset.pattern.permute.xlu0 3
  %880 = vperm.xlu0 %879, %v43
  %v881 = vpop.permute.xlu0 %880
  %883 = vset.pattern.permute.xlu0 3
  %884 = vperm.xlu0 %883, %v44
  %v885 = vpop.permute.xlu0 %884
  %887 = vset.pattern.permute.xlu0 3
  %888 = vperm.xlu0 %887, %v45
  %v889 = vpop.permute.xlu0 %888
  %891 = vset.pattern.permute.xlu0 3
  %892 = vperm.xlu0 %891, %v46
  %v893 = vpop.permute.xlu0 %892
  %895 = vset.pattern.permute.xlu0 3
  %896 = vperm.xlu0 %895, %v47
  %v897 = vpop.permute.xlu0 %896
  %899 = vset.pattern.permute.xlu0 3
  %900 = vperm.xlu0 %899, %v48
  %v901 = vpop.permute.xlu0 %900
  %903 = vset.pattern.permute.xlu0 3
  %904 = vperm.xlu0 %903, %v49
  %v905 = vpop.permute.xlu0 %904
  %907 = vset.pattern.permute.xlu0 3
  %908 = vperm.xlu0 %907, %v50
  %v909 = vpop.permute.xlu0 %908
  %911 = vset.pattern.permute.xlu0 3
  %912 = vperm.xlu0 %911, %v51
  %v913 = vpop.permute.xlu0 %912
  %915 = vset.pattern.permute.xlu0 3
  %916 = vperm.xlu0 %915, %v52
  %v917 = vpop.permute.xlu0 %916
  %919 = vset.pattern.permute.xlu0 3
  %920 = vperm.xlu0 %919, %v53
  %v921 = vpop.permute.xlu0 %920
  %923 = vset.pattern.permute.xlu0 3
  %924 = vperm.xlu0 %923, %v54
  %v925 = vpop.permute.xlu0 %924
  %927 = vset.pattern.permute.xlu0 3
  %928 = vperm.xlu0 %927, %v55
  %v929 = vpop.permute.xlu0 %928
  %931 = vset.pattern.permute.xlu0 3
  %932 = vperm.xlu0 %931, %v56
  %v933 = vpop.permute.xlu0 %932
  %v951 = vunpack.c.l.b16 %v847
  %v952 = vunpack.c.l.b16 %v848
  %v953 = vunpack.c.l.b16 %v849
  %v954 = vunpack.c.l.b16 %v850
  %v955 = vunpack.c.l.b16 %v851
  %v956 = vunpack.c.l.b16 %v852
  %v957 = vunpack.c.l.b16 %v853
  %v958 = vunpack.c.l.b16 %v854
  %v959 = vunpack.c.l.b16 %v855
  %v960 = vunpack.c.l.b16 %v856
  %v961 = vunpack.c.l.b16 %v857
  %v962 = vunpack.c.l.b16 %v858
  %v963 = vunpack.c.l.b16 %v859
  %v964 = vunpack.c.l.b16 %v860
  %v965 = vunpack.c.l.b16 %v861
  %v966 = vunpack.c.l.b16 %v862
  %v967 = vpack.c.b16 %v952, %v951
  %v968 = vpack.c.b16 %v954, %v953
  %v969 = vpack.c.b16 %v956, %v955
  %v970 = vpack.c.b16 %v958, %v957
  %v971 = vpack.c.b16 %v960, %v959
  %v972 = vpack.c.b16 %v962, %v961
  %v973 = vpack.c.b16 %v964, %v963
  %v974 = vpack.c.b16 %v966, %v965
  %983 = vmatprep.subr.bf16.mxu0 0
  %984 = vmatpush1.bf16.msra.mxu0 %v863
  %985 = vmatprep.subr.bf16.mxu0 0
  %986 = vmatpush1.bf16.msra.mxu0 %v864
  %987 = vmatprep.subr.bf16.mxu0 0
  %988 = vmatpush1.bf16.msra.mxu0 %v865
  %989 = vmatprep.subr.bf16.mxu0 0
  %990 = vmatpush1.bf16.msra.mxu0 %v866
  %991 = vmatprep.subr.bf16.mxu0 0
  %992 = vmatpush1.bf16.msra.mxu0 %v867
  %993 = vmatprep.subr.bf16.mxu0 0
  %994 = vmatpush1.bf16.msra.mxu0 %v868
  %995 = vmatprep.subr.bf16.mxu0 0
  %996 = vmatpush1.bf16.msra.mxu0 %v869
  %997 = vmatprep.subr.bf16.mxu0 0
  %998 = vmatpush1.bf16.msra.mxu0 %v870
  %999 = vmatprep.subr.bf16.mxu0 0
  %1000 = vmatpush1.bf16.msra.mxu0 0
  %1001 = vmatprep.subr.bf16.mxu0 0
  %1002 = vmatpush1.bf16.msra.mxu0 0
  %1003 = vmatprep.subr.bf16.mxu0 0
  %1004 = vmatpush1.bf16.msra.mxu0 0
  %1005 = vmatprep.subr.bf16.mxu0 0
  %1006 = vmatpush1.bf16.msra.mxu0 0
  %1007 = vmatprep.subr.bf16.mxu0 0
  %1008 = vmatpush1.bf16.msra.mxu0 0
  %1009 = vmatprep.subr.bf16.mxu0 0
  %1010 = vmatpush1.bf16.msra.mxu0 0
  %1011 = vmatprep.subr.bf16.mxu0 0
  %1012 = vmatpush1.bf16.msra.mxu0 0
  %1013 = vmatprep.subr.bf16.mxu0 0
  %1014 = vmatpush1.bf16.msra.mxu0 0
  %1015 = vmatprep.mubr.bf16.mxu0 0
  %1016 = vmatmul.mubr.bf16.gmra.mrb[0].mxu0 %v967
  %v1017 = vpop.f32.mrb[0].mxu0
  %v1018 = vadd.f32 %v873, %v1017
  %v1019 = vpop.f32.mrb[0].mxu0
  %v1020 = vpop.f32.mrb[0].mxu0
  %v1021 = vadd.f32 %v877, %v1020
  %v1022 = vpop.f32.mrb[0].mxu0
  %1023 = vmatprep.mubr.bf16.mxu0 0
  %1024 = vmatmul.mubr.bf16.gmra.mrb[0].mxu0 %v968
  %v1025 = vpop.f32.mrb[0].mxu0
  %v1026 = vadd.f32 %v881, %v1025
  %v1027 = vpop.f32.mrb[0].mxu0
  %v1028 = vpop.f32.mrb[0].mxu0
  %v1029 = vadd.f32 %v885, %v1028
  %v1030 = vpop.f32.mrb[0].mxu0
  %1031 = vmatprep.mubr.bf16.mxu0 0
  %1032 = vmatmul.mubr.bf16.gmra.mrb[0].mxu0 %v969
  %v1033 = vpop.f32.mrb[0].mxu0
  %v1034 = vadd.f32 %v889, %v1033
  %v1035 = vpop.f32.mrb[0].mxu0
  %v1036 = vpop.f32.mrb[0].mxu0
  %v1037 = vadd.f32 %v893, %v1036
  %v1038 = vpop.f32.mrb[0].mxu0
  %1039 = vmatprep.mubr.bf16.mxu0 0
  %1040 = vmatmul.mubr.bf16.gmra.mrb[0].mxu0 %v970
  %v1041 = vpop.f32.mrb[0].mxu0
  %v1042 = vadd.f32 %v897, %v1041
  %v1043 = vpop.f32.mrb[0].mxu0
  %v1044 = vpop.f32.mrb[0].mxu0
  %v1045 = vadd.f32 %v901, %v1044
  %v1046 = vpop.f32.mrb[0].mxu0
  %1047 = vmatprep.mubr.bf16.mxu0 0
  %1048 = vmatmul.mubr.bf16.gmra.mrb[0].mxu0 %v971
  %v1049 = vpop.f32.mrb[0].mxu0
  %v1050 = vadd.f32 %v905, %v1049
  %v1051 = vpop.f32.mrb[0].mxu0
  %v1052 = vpop.f32.mrb[0].mxu0
  %v1053 = vadd.f32 %v909, %v1052
  %v1054 = vpop.f32.mrb[0].mxu0
  %1055 = vmatprep.mubr.bf16.mxu0 0
  %1056 = vmatmul.mubr.bf16.gmra.mrb[0].mxu0 %v972
  %v1057 = vpop.f32.mrb[0].mxu0
  %v1058 = vadd.f32 %v913, %v1057
  %v1059 = vpop.f32.mrb[0].mxu0
  %v1060 = vpop.f32.mrb[0].mxu0
  %v1061 = vadd.f32 %v917, %v1060
  %v1062 = vpop.f32.mrb[0].mxu0
  %1063 = vmatprep.mubr.bf16.mxu0 0
  %1064 = vmatmul.mubr.bf16.gmra.mrb[0].mxu0 %v973
  %v1065 = vpop.f32.mrb[0].mxu0
  %v1066 = vadd.f32 %v921, %v1065
  %v1067 = vpop.f32.mrb[0].mxu0
  %v1068 = vpop.f32.mrb[0].mxu0
  %v1069 = vadd.f32 %v925, %v1068
  %v1070 = vpop.f32.mrb[0].mxu0
  %1071 = vmatprep.mubr.bf16.mxu0 0
  %1072 = vmatmul.mubr.bf16.gmra.mrb[0].mxu0 %v974
  %v1073 = vpop.f32.mrb[0].mxu0
  %v1074 = vadd.f32 %v929, %v1073
  %v1075 = vpop.f32.mrb[0].mxu0
  %v1076 = vpop.f32.mrb[0].mxu0
  %v1077 = vadd.f32 %v933, %v1076
  %v1078 = vpop.f32.mrb[0].mxu0
  %1079 = vdwg.mxu0
  %v1080 = vtanh.pop %v1018
  %v1081 = vtanh.pop %v1021
  %v1082 = vtanh.pop %v1026
  %v1083 = vtanh.pop %v1029
  %v1084 = vtanh.pop %v1034
  %v1085 = vtanh.pop %v1037
  %v1086 = vtanh.pop %v1042
  %v1087 = vtanh.pop %v1045
  %v1088 = vtanh.pop %v1050
  %v1089 = vtanh.pop %v1053
  %v1090 = vtanh.pop %v1058
  %v1091 = vtanh.pop %v1061
  %v1092 = vtanh.pop %v1066
  %v1093 = vtanh.pop %v1069
  %v1094 = vtanh.pop %v1074
  %v1095 = vtanh.pop %v1077
  %v1096 = vld [vmem:[%s4] sm:$0xff]
  %v1097 = vld [vmem:[%s5] sm:$0xff]
  %1099 = vset.pattern.permute.xlu0 0
  %1100 = vperm.xlu0 %1099, %v1097
  %v1101 = vpop.permute.xlu0 %1100
  %1103 = vmatprep.subr.mxu0 0.0
  %1104 = vmatpush1.msra.mxu0 %v1080
  %1105 = vmatprep.subr.mxu0 0.0
  %1106 = vmatpush1.msra.mxu0 %v1081
  %1107 = vmatprep.subr.mxu0 0.0
  %1108 = vmatpush1.msra.mxu0 %v1082
  %1109 = vmatprep.subr.mxu0 0.0
  %1110 = vmatpush1.msra.mxu0 %v1083
  %1111 = vmatprep.subr.mxu0 0.0
  %1112 = vmatpush1.msra.mxu0 %v1084
  %1113 = vmatprep.subr.mxu0 0.0
  %1114 = vmatpush1.msra.mxu0 %v1085
  %1115 = vmatprep.subr.mxu0 0.0
  %1116 = vmatpush1.msra.mxu0 %v1086
  %1117 = vmatprep.subr.mxu0 0.0
  %1118 = vmatpush1.msra.mxu0 %v1087
  %1119 = vmatprep.subr.mxu0 0.0
  %1120 = vmatpush1.msra.mxu0 %v1088
  %1121 = vmatprep.subr.mxu0 0.0
  %1122 = vmatpush1.msra.mxu0 %v1089
  %1123 = vmatprep.subr.mxu0 0.0
  %1124 = vmatpush1.msra.mxu0 %v1090
  %1125 = vmatprep.subr.mxu0 0.0
  %1126 = vmatpush1.msra.mxu0 %v1091
  %1127 = vmatprep.subr.mxu0 0.0
  %1128 = vmatpush1.msra.mxu0 %v1092
  %1129 = vmatprep.subr.mxu0 0.0
  %1130 = vmatpush1.msra.mxu0 %v1093
  %1131 = vmatprep.subr.mxu0 0.0
  %1132 = vmatpush1.msra.mxu0 %v1094
  %1133 = vmatprep.subr.mxu0 0.0
  %1134 = vmatpush1.msra.mxu0 %v1095
  %1135 = vmatprep.subr.mxu0 0.0
  %1136 = vmatpush1.msra.mxu0 0.0
  %1137 = vmatprep.subr.mxu0 0.0
  %1138 = vmatpush1.msra.mxu0 0.0
  %1139 = vmatprep.subr.mxu0 0.0
  %1140 = vmatpush1.msra.mxu0 0.0
  %1141 = vmatprep.subr.mxu0 0.0
  %1142 = vmatpush1.msra.mxu0 0.0
  %1143 = vmatprep.subr.mxu0 0.0
  %1144 = vmatpush1.msra.mxu0 0.0
  %1145 = vmatprep.subr.mxu0 0.0
  %1146 = vmatpush1.msra.mxu0 0.0
  %1147 = vmatprep.subr.mxu0 0.0
  %1148 = vmatpush1.msra.mxu0 0.0
  %1149 = vmatprep.subr.mxu0 0.0
  %1150 = vmatpush1.msra.mxu0 0.0
  %1151 = vmatprep.subr.mxu0 0.0
  %1152 = vmatpush1.msra.mxu0 0.0
  %1153 = vmatprep.subr.mxu0 0.0
  %1154 = vmatpush1.msra.mxu0 0.0
  %1155 = vmatprep.subr.mxu0 0.0
  %1156 = vmatpush1.msra.mxu0 0.0
  %1157 = vmatprep.subr.mxu0 0.0
  %1158 = vmatpush1.msra.mxu0 0.0
  %1159 = vmatprep.subr.mxu0 0.0
  %1160 = vmatpush1.msra.mxu0 0.0
  %1161 = vmatprep.subr.mxu0 0.0
  %1162 = vmatpush1.msra.mxu0 0.0
  %1163 = vmatprep.subr.mxu0 0.0
  %1164 = vmatpush1.msra.mxu0 0.0
  %1165 = vmatprep.subr.mxu0 0.0
  %1166 = vmatpush1.msra.mxu0 0.0
  %1167 = vmatprep.mubr.f32.mxu0 0.0
  %1168 = vmatmul.mubr.f32.gmra.mrb[0].mxu0 %v1096
  %v1169 = vpop.f32.mrb[0].mxu0
  %v1170 = vadd.f32 %v1101, %v1169
  %v1171 = vpop.f32.mrb[0].mxu0
  %1172 = vdwg.mxu0
  %1173 = vst.msk [vmem:[%s6] sm:$0xff] %vm137, %v1170
  // Predicated region
  $region26: #{gray_scott_pinn_forward.1} parent=0 // pred_check
    _
  $region27: #{gray_scott_pinn_forward.1} parent=0 // pred_check_branch
    %1175 = sbr.rel (0) target = $region29
  $region28: #{gray_scott_pinn_forward.1} parent=0 // pred_region
    _
  $region29: #{gray_scott_pinn_forward.1} parent=0 // pred_fallthru
    _
  // Predicated region
  $region30: #{gray_scott_pinn_forward.1} parent=0 // pred_check
    _
  $region31: #{gray_scott_pinn_forward.1} parent=0 // pred_check_branch
    %1177 = sbr.rel (0) target = $region33
  $region32: #{gray_scott_pinn_forward.1} parent=0 // pred_region
    _
  $region33: #{gray_scott_pinn_forward.1} parent=0 // pred_fallthru
    _

</llo_original>
